<compile_context>
chip_gen: v7x
topology: tpu7x:2x2x1
jax: 0.10.0
libtpu: 0.0.40
codegen_flags: <defaults>
</compile_context>

<pallas_src>
import math

import jax
import jax.numpy as jnp
from jax import lax
from jax.experimental import pallas as pl
from jax.experimental.pallas import tpu as pltpu


def _round_up(a, b):
    return ((a + b - 1) // b) * b


# ---------------------------------------------------------------------------
# Spectral complex mode-mixing kernel.
#   out[o, gb, m] = sum_i x[i, gb, m] * w[i, o, gb, m]      (complex, gb = 4*B)
# The 4 spectral corners live in the sublane axis (gb = corner*B + batch), so
# at B=2 all 8 sublanes carry data and the whole mix is one grid step.
# Plain 4-multiply complex product: mul and add share the VALU slot, so the
# 3-mult Karatsuba form saves nothing on the VPU and costs a 3rd weight stream.
# ---------------------------------------------------------------------------
def spectral_kernel(xr_ref, xi_ref, wr_ref, wi_ref, or_ref, oi_ref):
    ci = xr_ref.shape[0]

    def body(i, carry):
        acc_r, acc_i = carry
        xr = xr_ref[i]              # (GB, M)
        xi = xi_ref[i]
        wr = wr_ref[i]              # (Co, GB, M)
        wi = wi_ref[i]
        acc_r = acc_r + xr[None] * wr - xi[None] * wi
        acc_i = acc_i + xr[None] * wi + xi[None] * wr
        return acc_r, acc_i

    zero = jnp.zeros(or_ref.shape, jnp.float32)
    # TODO(synk): at production widths (C >= ~32-64) move this contraction onto
    # the MXU (blocked (B*modes, Ci) @ (Ci, Co) real matmuls) and chunk the
    # channel loop / modes; the VPU form scales as Ci*Co elementwise ops/mode.
    acc_r, acc_i = lax.fori_loop(0, ci, body, (zero, zero), unroll=True)
    or_ref[...] = acc_r
    oi_ref[...] = acc_i


def spectral_mix(xr_p, xi_p, wr_p, wi_p):
    ci, gb, m = xr_p.shape
    co = wr_p.shape[1]
    vmem = pl.BlockSpec(memory_space=pltpu.MemorySpace.VMEM)
    # Single-step (no grid): corner data is tiny and now fills the sublanes, so
    # the old 4-step grid only paid fixed pipeline overhead.  (No v7x 2-TC
    # sharding from this kernel anymore -- acceptable, it is microsecond-scale.)
    out_r, out_i = pl.pallas_call(
        spectral_kernel,
        out_shape=(jax.ShapeDtypeStruct((co, gb, m), jnp.float32),
                   jax.ShapeDtypeStruct((co, gb, m), jnp.float32)),
        in_specs=[vmem, vmem, vmem, vmem],
        out_specs=(vmem, vmem),
    )(xr_p, xi_p, wr_p, wi_p)
    return out_r, out_i


# ---------------------------------------------------------------------------
# Pointwise 1x1 Conv3d + residual add (+ exact erf-GELU), channels-first.
#   x/x1/o tiles: (1, C, TILE_S)  — last dim lane-dense (multiple of 128)
#   wt: (C_out, C_in) (w2 transposed once in the wrapper), b: (C, 1)
# Inputs stream as bf16 (DMA/storage only); matmul accumulates in f32 on MXU.
# ---------------------------------------------------------------------------
def make_pointwise_kernel(apply_gelu):
    def kernel(x_ref, x1_ref, wt_ref, b_ref, o_ref):
        y = jnp.dot(wt_ref[...], x_ref[0], preferred_element_type=jnp.float32)
        y = y + b_ref[...] + x1_ref[0].astype(jnp.float32)
        if apply_gelu:
            # exact GELU (matches F.gelu default, erf-based)
            # TODO(synk): on v7x, if this flips the kernel from HBM- to
            # VALU-bound, consider tanh-approx GELU (EUP slot) if tolerance allows.
            y = 0.5 * y * (1.0 + lax.erf(y * 0.7071067811865476))
        o_ref[0] = y.astype(o_ref.dtype)
    return kernel


def pointwise_add_gelu(x_bcs, x1_bcs, w2t, bias, apply_gelu, *,
                       tile_s=32768, io_dtype=jnp.bfloat16):
    B, C, S = x_bcs.shape
    # Big lane-dense spatial tile (HBM roofline), multiple of 128, clamped to S.
    ts = min(_round_up(tile_s, 128), _round_up(S, 128))
    Sp = _round_up(S, ts)

    x_bcs = x_bcs.astype(io_dtype)
    x1_bcs = x1_bcs.astype(io_dtype)
    if Sp != S:
        pad = ((0, 0), (0, 0), (0, Sp - S))
        x_bcs = jnp.pad(x_bcs, pad)
        x1_bcs = jnp.pad(x1_bcs, pad)

    data_spec = pl.BlockSpec((1, C, ts), lambda b, s: (b, 0, s))
    out = pl.pallas_call(
        make_pointwise_kernel(apply_gelu),
        out_shape=jax.ShapeDtypeStruct((B, C, Sp), jnp.float32),
        grid=(B, Sp // ts),
        in_specs=[data_spec, data_spec,
                  pl.BlockSpec((C, C), lambda b, s: (0, 0)),
                  pl.BlockSpec((C, 1), lambda b, s: (0, 0))],
        out_specs=pl.BlockSpec((1, C, ts), lambda b, s: (b, 0, s)),
        compiler_params=pltpu.CompilerParams(
            dimension_semantics=("parallel", "parallel")),
    )(x_bcs, x1_bcs, w2t.astype(io_dtype), bias.reshape(C, 1).astype(jnp.float32))
    if Sp != S:
        out = out[:, :, :S]
    return out


# ---------------------------------------------------------------------------
# FNO_layer forward
# ---------------------------------------------------------------------------
def fno_layer_forward(x, params, modes, last=False, *,
                      pointwise_io_dtype=jnp.bfloat16):
    m1, m2, m3 = modes
    B, C, X, Y, T = x.shape
    M = m1 * m2 * m3
    GB = 4 * B
    Tf = T // 2 + 1

    # --- SpectralConv3d ---
    # TODO(synk): FFT has no Pallas primitive; rfftn/irfftn stay in plain JAX.
    x_ft = jnp.fft.rfftn(x, axes=(-3, -2, -1))            # (B, C, X, Y, Tf) c64
    corners = jnp.stack([
        x_ft[:, :, :m1, :m2, :m3],
        x_ft[:, :, -m1:, :m2, :m3],
        x_ft[:, :, :m1, -m2:, :m3],
        x_ft[:, :, -m1:, -m2:, :m3],
    ], axis=0)                                            # (4, B, C, m1, m2, m3)

    # Pack x: corners fold into the sublane axis (gb = corner*B + batch);
    # no broadcast over Co (the weights carry the Co axis).
    def pack_x(a):                                        # -> (Ci, 4B, M)
        a = a.reshape(4, B, C, M)
        a = jnp.transpose(a, (2, 0, 1, 3))                # (Ci, 4, B, M)
        return a.reshape(C, GB, M).astype(jnp.float32)

    xr_p = pack_x(jnp.real(corners))
    xi_p = pack_x(jnp.imag(corners))

    # Weights (4, Ci, Co, m1, m2, m3) -> (Ci, Co, 4B, M): tiled over b once so the
    # per-sublane corner of x sees its matching corner weight.
    # TODO(synk): at production C the b-tiling of weights should become an
    # in-kernel sublane broadcast to bound weight VMEM footprint.
    def pack_w(w):
        w = w.reshape(4, C, C, M)
        w = jnp.transpose(w, (1, 2, 0, 3))                # (Ci, Co, 4, M)
        w = jnp.broadcast_to(w[:, :, :, None, :], (C, C, 4, B, M))
        return w.reshape(C, C, GB, M).astype(jnp.float32)

    wr_p = pack_w(params["spec_wr"])
    wi_p = pack_w(params["spec_wi"])

    or_, oi_ = spectral_mix(xr_p, xi_p, wr_p, wi_p)       # (Co, 4B, M) each
    oc = (or_ + 1j * oi_).astype(jnp.complex64)
    oc = oc.reshape(C, 4, B, m1, m2, m3)
    oc = jnp.transpose(oc, (1, 2, 0, 3, 4, 5))            # (4, B, Co, m1, m2, m3)

    # Assemble out_ft directly at (B, C, X, Y, Tf): pad the tiny corner tensor
    # along T once, then one concat pass builds the full spectrum (no extra
    # full-tensor pad afterwards).
    if X >= 2 * m1 and Y >= 2 * m2:
        ocp = jnp.pad(oc, ((0, 0),) * 5 + ((0, Tf - m3),))     # (4,B,C,m1,m2,Tf)
        zy = jnp.zeros((B, C, m1, Y - 2 * m2, Tf), jnp.complex64)
        top = jnp.concatenate([ocp[0], zy, ocp[2]], axis=3)    # X rows [0:m1]
        bot = jnp.concatenate([ocp[1], zy, ocp[3]], axis=3)    # X rows [X-m1:X]
        zx = jnp.zeros((B, C, X - 2 * m1, Y, Tf), jnp.complex64)
        out_ft = jnp.concatenate([top, zx, bot], axis=2)       # (B, C, X, Y, Tf)
    else:
        # Overlapping corners: match the reference's sequential scatter writes.
        out_ft = jnp.zeros((B, C, X, Y, Tf), jnp.complex64)
        out_ft = out_ft.at[:, :, :m1, :m2, :m3].set(oc[0])
        out_ft = out_ft.at[:, :, -m1:, :m2, :m3].set(oc[1])
        out_ft = out_ft.at[:, :, :m1, -m2:, :m3].set(oc[2])
        out_ft = out_ft.at[:, :, -m1:, -m2:, :m3].set(oc[3])

    x1 = jnp.fft.irfftn(out_ft, s=(X, Y, T), axes=(-3, -2, -1)).astype(jnp.float32)

    # --- 1x1 Conv3d + residual add + GELU (Pallas, channels-first, lane-dense) ---
    S = X * Y * T
    y = pointwise_add_gelu(
        x.reshape(B, C, S),
        x1.reshape(B, C, S),
        jnp.transpose(params["w2"]),                      # (out, in)
        params["b2"],
        apply_gelu=not last,
        io_dtype=pointwise_io_dtype)
    return y.reshape(B, C, X, Y, T)


# ---------------------------------------------------------------------------
# Pure-JAX reference (semantics check)
# ---------------------------------------------------------------------------
def fno_layer_reference(x, params, modes, last=False):
    m1, m2, m3 = modes
    B, C, X, Y, T = x.shape
    wc = (params["spec_wr"] + 1j * params["spec_wi"]).astype(jnp.complex64)
    x_ft = jnp.fft.rfftn(x, axes=(-3, -2, -1))
    out_ft = jnp.zeros((B, C, X, Y, T // 2 + 1), jnp.complex64)

    def mul(inp, w):
        return jnp.einsum('bixyz,ioxyz->boxyz', inp, w)

    out_ft = out_ft.at[:, :, :m1, :m2, :m3].set(mul(x_ft[:, :, :m1, :m2, :m3], wc[0]))
    out_ft = out_ft.at[:, :, -m1:, :m2, :m3].set(mul(x_ft[:, :, -m1:, :m2, :m3], wc[1]))
    out_ft = out_ft.at[:, :, :m1, -m2:, :m3].set(mul(x_ft[:, :, :m1, -m2:, :m3], wc[2]))
    out_ft = out_ft.at[:, :, -m1:, -m2:, :m3].set(mul(x_ft[:, :, -m1:, -m2:, :m3], wc[3]))
    x1 = jnp.fft.irfftn(out_ft, s=(X, Y, T), axes=(-3, -2, -1))
    x2 = jnp.einsum('bixyt,io->boxyt', x, params["w2"]) \
        + params["b2"][None, :, None, None, None]
    y = x1 + x2
    if not last:
        y = jax.nn.gelu(y, approximate=False)
    return y


if __name__ == "__main__":
    key = jax.random.PRNGKey(0)
    # small but representative: batch=2, width=8, spatial 16x16, time 8
    B, C, X, Y, T = 2, 8, 16, 16, 8
    m1, m2, m3 = 4, 4, 3

    k_x, k_wr, k_wi, k_w2, k_b2 = jax.random.split(key, 5)
    x = jax.random.normal(k_x, (B, C, X, Y, T), jnp.float32)

    scale = 1.0 / (C * C)
    params = {
        # 4 corner weight tensors (weights1..4), complex split into real/imag
        "spec_wr": scale * jax.random.uniform(k_wr, (4, C, C, m1, m2, m3), jnp.float32),
        "spec_wi": scale * jax.random.uniform(k_wi, (4, C, C, m1, m2, m3), jnp.float32),
        # 1x1x1 Conv3d weight (stored as (in, out)) and bias
        "w2": jax.random.uniform(k_w2, (C, C), jnp.float32, -1.0, 1.0) / math.sqrt(C),
        "b2": jax.random.uniform(k_b2, (C,), jnp.float32, -1.0, 1.0) / math.sqrt(C),
    }

    ref = fno_layer_reference(x, params, (m1, m2, m3), last=False)

    # Strict f32-I/O check of the kernels against the reference.
    out32 = fno_layer_forward(x, params, (m1, m2, m3), last=False,
                              pointwise_io_dtype=jnp.float32)
    out32 = jax.block_until_ready(out32)
    err32 = float(jnp.max(jnp.abs(out32 - ref)))
    assert err32 < 2e-3, f"f32 max abs err {err32}"

    # bf16-I/O fast path (production default): pointwise inputs stream as bf16,
    # accumulation stays f32 -> slightly looser tolerance.
    out16 = fno_layer_forward(x, params, (m1, m2, m3), last=False)
    out16 = jax.block_until_ready(out16)
    err16 = float(jnp.max(jnp.abs(out16 - ref)))
    assert err16 < 5e-2, f"bf16 max abs err {err16}"

    print("KERNEL_OK")
</pallas_src>

<mosaic_0001>
module attributes {stable_mosaic.version = 11 : i64} {
  func.func @spectral_kernel(%arg0: memref<8x8x48xf32, #tpu.memory_space<vmem>>, %arg1: memref<8x8x48xf32, #tpu.memory_space<vmem>>, %arg2: memref<8x8x8x48xf32, #tpu.memory_space<vmem>>, %arg3: memref<8x8x8x48xf32, #tpu.memory_space<vmem>>, %arg4: memref<8x8x48xf32, #tpu.memory_space<vmem>>, %arg5: memref<8x8x48xf32, #tpu.memory_space<vmem>>) attributes {dimension_semantics = [], scalar_prefetch = 0 : i64, scratch_operands = 0 : i64, tpu.core_type = #tpu.core_type<tc>} {
    %cst = arith.constant 0.000000e+00 : f32
    %0 = vector.broadcast %cst : f32 to vector<8x8x48xf32>
    %c0_i32 = arith.constant 0 : i32
    %1 = arith.index_cast %c0_i32 : i32 to index
    %c0 = arith.constant 0 : index
    %c0_0 = arith.constant 0 : index
    %2 = vector.load %arg0[%1, %c0, %c0_0] : memref<8x8x48xf32, #tpu.memory_space<vmem>>, vector<1x8x48xf32>
    %3 = vector.shape_cast %2 : vector<1x8x48xf32> to vector<8x48xf32>
    %4 = arith.index_cast %c0_i32 : i32 to index
    %c0_1 = arith.constant 0 : index
    %c0_2 = arith.constant 0 : index
    %5 = vector.load %arg1[%4, %c0_1, %c0_2] : memref<8x8x48xf32, #tpu.memory_space<vmem>>, vector<1x8x48xf32>
    %6 = vector.shape_cast %5 : vector<1x8x48xf32> to vector<8x48xf32>
    %7 = arith.index_cast %c0_i32 : i32 to index
    %c0_3 = arith.constant 0 : index
    %c0_4 = arith.constant 0 : index
    %c0_5 = arith.constant 0 : index
    %8 = vector.load %arg2[%7, %c0_3, %c0_4, %c0_5] : memref<8x8x8x48xf32, #tpu.memory_space<vmem>>, vector<1x8x8x48xf32>
    %9 = vector.shape_cast %8 : vector<1x8x8x48xf32> to vector<8x8x48xf32>
    %10 = arith.index_cast %c0_i32 : i32 to index
    %c0_6 = arith.constant 0 : index
    %c0_7 = arith.constant 0 : index
    %c0_8 = arith.constant 0 : index
    %11 = vector.load %arg3[%10, %c0_6, %c0_7, %c0_8] : memref<8x8x8x48xf32, #tpu.memory_space<vmem>>, vector<1x8x8x48xf32>
    %12 = vector.shape_cast %11 : vector<1x8x8x48xf32> to vector<8x8x48xf32>
    %13 = vector.shape_cast %3 : vector<8x48xf32> to vector<1x8x48xf32>
    %14 = vector.broadcast %13 : vector<1x8x48xf32> to vector<8x8x48xf32>
    %15 = arith.mulf %14, %9 : vector<8x8x48xf32>
    %16 = arith.addf %0, %15 : vector<8x8x48xf32>
    %17 = vector.shape_cast %6 : vector<8x48xf32> to vector<1x8x48xf32>
    %18 = vector.broadcast %17 : vector<1x8x48xf32> to vector<8x8x48xf32>
    %19 = arith.mulf %18, %12 : vector<8x8x48xf32>
    %20 = arith.subf %16, %19 : vector<8x8x48xf32>
    %21 = vector.shape_cast %3 : vector<8x48xf32> to vector<1x8x48xf32>
    %22 = vector.broadcast %21 : vector<1x8x48xf32> to vector<8x8x48xf32>
    %23 = arith.mulf %22, %12 : vector<8x8x48xf32>
    %24 = arith.addf %0, %23 : vector<8x8x48xf32>
    %25 = vector.shape_cast %6 : vector<8x48xf32> to vector<1x8x48xf32>
    %26 = vector.broadcast %25 : vector<1x8x48xf32> to vector<8x8x48xf32>
    %27 = arith.mulf %26, %9 : vector<8x8x48xf32>
    %28 = arith.addf %24, %27 : vector<8x8x48xf32>
    %c1_i32 = arith.constant 1 : i32
    %29 = arith.index_cast %c1_i32 : i32 to index
    %c0_9 = arith.constant 0 : index
    %c0_10 = arith.constant 0 : index
    %30 = vector.load %arg0[%29, %c0_9, %c0_10] : memref<8x8x48xf32, #tpu.memory_space<vmem>>, vector<1x8x48xf32>
    %31 = vector.shape_cast %30 : vector<1x8x48xf32> to vector<8x48xf32>
    %32 = arith.index_cast %c1_i32 : i32 to index
    %c0_11 = arith.constant 0 : index
    %c0_12 = arith.constant 0 : index
    %33 = vector.load %arg1[%32, %c0_11, %c0_12] : memref<8x8x48xf32, #tpu.memory_space<vmem>>, vector<1x8x48xf32>
    %34 = vector.shape_cast %33 : vector<1x8x48xf32> to vector<8x48xf32>
    %35 = arith.index_cast %c1_i32 : i32 to index
    %c0_13 = arith.constant 0 : index
    %c0_14 = arith.constant 0 : index
    %c0_15 = arith.constant 0 : index
    %36 = vector.load %arg2[%35, %c0_13, %c0_14, %c0_15] : memref<8x8x8x48xf32, #tpu.memory_space<vmem>>, vector<1x8x8x48xf32>
    %37 = vector.shape_cast %36 : vector<1x8x8x48xf32> to vector<8x8x48xf32>
    %38 = arith.index_cast %c1_i32 : i32 to index
    %c0_16 = arith.constant 0 : index
    %c0_17 = arith.constant 0 : index
    %c0_18 = arith.constant 0 : index
    %39 = vector.load %arg3[%38, %c0_16, %c0_17, %c0_18] : memref<8x8x8x48xf32, #tpu.memory_space<vmem>>, vector<1x8x8x48xf32>
    %40 = vector.shape_cast %39 : vector<1x8x8x48xf32> to vector<8x8x48xf32>
    %41 = vector.shape_cast %31 : vector<8x48xf32> to vector<1x8x48xf32>
    %42 = vector.broadcast %41 : vector<1x8x48xf32> to vector<8x8x48xf32>
    %43 = arith.mulf %42, %37 : vector<8x8x48xf32>
    %44 = arith.addf %20, %43 : vector<8x8x48xf32>
    %45 = vector.shape_cast %34 : vector<8x48xf32> to vector<1x8x48xf32>
    %46 = vector.broadcast %45 : vector<1x8x48xf32> to vector<8x8x48xf32>
    %47 = arith.mulf %46, %40 : vector<8x8x48xf32>
    %48 = arith.subf %44, %47 : vector<8x8x48xf32>
    %49 = vector.shape_cast %31 : vector<8x48xf32> to vector<1x8x48xf32>
    %50 = vector.broadcast %49 : vector<1x8x48xf32> to vector<8x8x48xf32>
    %51 = arith.mulf %50, %40 : vector<8x8x48xf32>
    %52 = arith.addf %28, %51 : vector<8x8x48xf32>
    %53 = vector.shape_cast %34 : vector<8x48xf32> to vector<1x8x48xf32>
    %54 = vector.broadcast %53 : vector<1x8x48xf32> to vector<8x8x48xf32>
    %55 = arith.mulf %54, %37 : vector<8x8x48xf32>
    %56 = arith.addf %52, %55 : vector<8x8x48xf32>
    %c2_i32 = arith.constant 2 : i32
    %57 = arith.index_cast %c2_i32 : i32 to index
    %c0_19 = arith.constant 0 : index
    %c0_20 = arith.constant 0 : index
    %58 = vector.load %arg0[%57, %c0_19, %c0_20] : memref<8x8x48xf32, #tpu.memory_space<vmem>>, vector<1x8x48xf32>
    %59 = vector.shape_cast %58 : vector<1x8x48xf32> to vector<8x48xf32>
    %60 = arith.index_cast %c2_i32 : i32 to index
    %c0_21 = arith.constant 0 : index
    %c0_22 = arith.constant 0 : index
    %61 = vector.load %arg1[%60, %c0_21, %c0_22] : memref<8x8x48xf32, #tpu.memory_space<vmem>>, vector<1x8x48xf32>
    %62 = vector.shape_cast %61 : vector<1x8x48xf32> to vector<8x48xf32>
    %63 = arith.index_cast %c2_i32 : i32 to index
    %c0_23 = arith.constant 0 : index
    %c0_24 = arith.constant 0 : index
    %c0_25 = arith.constant 0 : index
    %64 = vector.load %arg2[%63, %c0_23, %c0_24, %c0_25] : memref<8x8x8x48xf32, #tpu.memory_space<vmem>>, vector<1x8x8x48xf32>
    %65 = vector.shape_cast %64 : vector<1x8x8x48xf32> to vector<8x8x48xf32>
    %66 = arith.index_cast %c2_i32 : i32 to index
    %c0_26 = arith.constant 0 : index
    %c0_27 = arith.constant 0 : index
    %c0_28 = arith.constant 0 : index
    %67 = vector.load %arg3[%66, %c0_26, %c0_27, %c0_28] : memref<8x8x8x48xf32, #tpu.memory_space<vmem>>, vector<1x8x8x48xf32>
    %68 = vector.shape_cast %67 : vector<1x8x8x48xf32> to vector<8x8x48xf32>
    %69 = vector.shape_cast %59 : vector<8x48xf32> to vector<1x8x48xf32>
    %70 = vector.broadcast %69 : vector<1x8x48xf32> to vector<8x8x48xf32>
    %71 = arith.mulf %70, %65 : vector<8x8x48xf32>
    %72 = arith.addf %48, %71 : vector<8x8x48xf32>
    %73 = vector.shape_cast %62 : vector<8x48xf32> to vector<1x8x48xf32>
    %74 = vector.broadcast %73 : vector<1x8x48xf32> to vector<8x8x48xf32>
    %75 = arith.mulf %74, %68 : vector<8x8x48xf32>
    %76 = arith.subf %72, %75 : vector<8x8x48xf32>
    %77 = vector.shape_cast %59 : vector<8x48xf32> to vector<1x8x48xf32>
    %78 = vector.broadcast %77 : vector<1x8x48xf32> to vector<8x8x48xf32>
    %79 = arith.mulf %78, %68 : vector<8x8x48xf32>
    %80 = arith.addf %56, %79 : vector<8x8x48xf32>
    %81 = vector.shape_cast %62 : vector<8x48xf32> to vector<1x8x48xf32>
    %82 = vector.broadcast %81 : vector<1x8x48xf32> to vector<8x8x48xf32>
    %83 = arith.mulf %82, %65 : vector<8x8x48xf32>
    %84 = arith.addf %80, %83 : vector<8x8x48xf32>
    %c3_i32 = arith.constant 3 : i32
    %85 = arith.index_cast %c3_i32 : i32 to index
    %c0_29 = arith.constant 0 : index
    %c0_30 = arith.constant 0 : index
    %86 = vector.load %arg0[%85, %c0_29, %c0_30] : memref<8x8x48xf32, #tpu.memory_space<vmem>>, vector<1x8x48xf32>
    %87 = vector.shape_cast %86 : vector<1x8x48xf32> to vector<8x48xf32>
    %88 = arith.index_cast %c3_i32 : i32 to index
    %c0_31 = arith.constant 0 : index
    %c0_32 = arith.constant 0 : index
    %89 = vector.load %arg1[%88, %c0_31, %c0_32] : memref<8x8x48xf32, #tpu.memory_space<vmem>>, vector<1x8x48xf32>
    %90 = vector.shape_cast %89 : vector<1x8x48xf32> to vector<8x48xf32>
    %91 = arith.index_cast %c3_i32 : i32 to index
    %c0_33 = arith.constant 0 : index
    %c0_34 = arith.constant 0 : index
    %c0_35 = arith.constant 0 : index
    %92 = vector.load %arg2[%91, %c0_33, %c0_34, %c0_35] : memref<8x8x8x48xf32, #tpu.memory_space<vmem>>, vector<1x8x8x48xf32>
    %93 = vector.shape_cast %92 : vector<1x8x8x48xf32> to vector<8x8x48xf32>
    %94 = arith.index_cast %c3_i32 : i32 to index
    %c0_36 = arith.constant 0 : index
    %c0_37 = arith.constant 0 : index
    %c0_38 = arith.constant 0 : index
    %95 = vector.load %arg3[%94, %c0_36, %c0_37, %c0_38] : memref<8x8x8x48xf32, #tpu.memory_space<vmem>>, vector<1x8x8x48xf32>
    %96 = vector.shape_cast %95 : vector<1x8x8x48xf32> to vector<8x8x48xf32>
    %97 = vector.shape_cast %87 : vector<8x48xf32> to vector<1x8x48xf32>
    %98 = vector.broadcast %97 : vector<1x8x48xf32> to vector<8x8x48xf32>
    %99 = arith.mulf %98, %93 : vector<8x8x48xf32>
    %100 = arith.addf %76, %99 : vector<8x8x48xf32>
    %101 = vector.shape_cast %90 : vector<8x48xf32> to vector<1x8x48xf32>
    %102 = vector.broadcast %101 : vector<1x8x48xf32> to vector<8x8x48xf32>
    %103 = arith.mulf %102, %96 : vector<8x8x48xf32>
    %104 = arith.subf %100, %103 : vector<8x8x48xf32>
    %105 = vector.shape_cast %87 : vector<8x48xf32> to vector<1x8x48xf32>
    %106 = vector.broadcast %105 : vector<1x8x48xf32> to vector<8x8x48xf32>
    %107 = arith.mulf %106, %96 : vector<8x8x48xf32>
    %108 = arith.addf %84, %107 : vector<8x8x48xf32>
    %109 = vector.shape_cast %90 : vector<8x48xf32> to vector<1x8x48xf32>
    %110 = vector.broadcast %109 : vector<1x8x48xf32> to vector<8x8x48xf32>
    %111 = arith.mulf %110, %93 : vector<8x8x48xf32>
    %112 = arith.addf %108, %111 : vector<8x8x48xf32>
    %c4_i32 = arith.constant 4 : i32
    %113 = arith.index_cast %c4_i32 : i32 to index
    %c0_39 = arith.constant 0 : index
    %c0_40 = arith.constant 0 : index
    %114 = vector.load %arg0[%113, %c0_39, %c0_40] : memref<8x8x48xf32, #tpu.memory_space<vmem>>, vector<1x8x48xf32>
    %115 = vector.shape_cast %114 : vector<1x8x48xf32> to vector<8x48xf32>
    %116 = arith.index_cast %c4_i32 : i32 to index
    %c0_41 = arith.constant 0 : index
    %c0_42 = arith.constant 0 : index
    %117 = vector.load %arg1[%116, %c0_41, %c0_42] : memref<8x8x48xf32, #tpu.memory_space<vmem>>, vector<1x8x48xf32>
    %118 = vector.shape_cast %117 : vector<1x8x48xf32> to vector<8x48xf32>
    %119 = arith.index_cast %c4_i32 : i32 to index
    %c0_43 = arith.constant 0 : index
    %c0_44 = arith.constant 0 : index
    %c0_45 = arith.constant 0 : index
    %120 = vector.load %arg2[%119, %c0_43, %c0_44, %c0_45] : memref<8x8x8x48xf32, #tpu.memory_space<vmem>>, vector<1x8x8x48xf32>
    %121 = vector.shape_cast %120 : vector<1x8x8x48xf32> to vector<8x8x48xf32>
    %122 = arith.index_cast %c4_i32 : i32 to index
    %c0_46 = arith.constant 0 : index
    %c0_47 = arith.constant 0 : index
    %c0_48 = arith.constant 0 : index
    %123 = vector.load %arg3[%122, %c0_46, %c0_47, %c0_48] : memref<8x8x8x48xf32, #tpu.memory_space<vmem>>, vector<1x8x8x48xf32>
    %124 = vector.shape_cast %123 : vector<1x8x8x48xf32> to vector<8x8x48xf32>
    %125 = vector.shape_cast %115 : vector<8x48xf32> to vector<1x8x48xf32>
    %126 = vector.broadcast %125 : vector<1x8x48xf32> to vector<8x8x48xf32>
    %127 = arith.mulf %126, %121 : vector<8x8x48xf32>
    %128 = arith.addf %104, %127 : vector<8x8x48xf32>
    %129 = vector.shape_cast %118 : vector<8x48xf32> to vector<1x8x48xf32>
    %130 = vector.broadcast %129 : vector<1x8x48xf32> to vector<8x8x48xf32>
    %131 = arith.mulf %130, %124 : vector<8x8x48xf32>
    %132 = arith.subf %128, %131 : vector<8x8x48xf32>
    %133 = vector.shape_cast %115 : vector<8x48xf32> to vector<1x8x48xf32>
    %134 = vector.broadcast %133 : vector<1x8x48xf32> to vector<8x8x48xf32>
    %135 = arith.mulf %134, %124 : vector<8x8x48xf32>
    %136 = arith.addf %112, %135 : vector<8x8x48xf32>
    %137 = vector.shape_cast %118 : vector<8x48xf32> to vector<1x8x48xf32>
    %138 = vector.broadcast %137 : vector<1x8x48xf32> to vector<8x8x48xf32>
    %139 = arith.mulf %138, %121 : vector<8x8x48xf32>
    %140 = arith.addf %136, %139 : vector<8x8x48xf32>
    %c5_i32 = arith.constant 5 : i32
    %141 = arith.index_cast %c5_i32 : i32 to index
    %c0_49 = arith.constant 0 : index
    %c0_50 = arith.constant 0 : index
    %142 = vector.load %arg0[%141, %c0_49, %c0_50] : memref<8x8x48xf32, #tpu.memory_space<vmem>>, vector<1x8x48xf32>
    %143 = vector.shape_cast %142 : vector<1x8x48xf32> to vector<8x48xf32>
    %144 = arith.index_cast %c5_i32 : i32 to index
    %c0_51 = arith.constant 0 : index
    %c0_52 = arith.constant 0 : index
    %145 = vector.load %arg1[%144, %c0_51, %c0_52] : memref<8x8x48xf32, #tpu.memory_space<vmem>>, vector<1x8x48xf32>
    %146 = vector.shape_cast %145 : vector<1x8x48xf32> to vector<8x48xf32>
    %147 = arith.index_cast %c5_i32 : i32 to index
    %c0_53 = arith.constant 0 : index
    %c0_54 = arith.constant 0 : index
    %c0_55 = arith.constant 0 : index
    %148 = vector.load %arg2[%147, %c0_53, %c0_54, %c0_55] : memref<8x8x8x48xf32, #tpu.memory_space<vmem>>, vector<1x8x8x48xf32>
    %149 = vector.shape_cast %148 : vector<1x8x8x48xf32> to vector<8x8x48xf32>
    %150 = arith.index_cast %c5_i32 : i32 to index
    %c0_56 = arith.constant 0 : index
    %c0_57 = arith.constant 0 : index
    %c0_58 = arith.constant 0 : index
    %151 = vector.load %arg3[%150, %c0_56, %c0_57, %c0_58] : memref<8x8x8x48xf32, #tpu.memory_space<vmem>>, vector<1x8x8x48xf32>
    %152 = vector.shape_cast %151 : vector<1x8x8x48xf32> to vector<8x8x48xf32>
    %153 = vector.shape_cast %143 : vector<8x48xf32> to vector<1x8x48xf32>
    %154 = vector.broadcast %153 : vector<1x8x48xf32> to vector<8x8x48xf32>
    %155 = arith.mulf %154, %149 : vector<8x8x48xf32>
    %156 = arith.addf %132, %155 : vector<8x8x48xf32>
    %157 = vector.shape_cast %146 : vector<8x48xf32> to vector<1x8x48xf32>
    %158 = vector.broadcast %157 : vector<1x8x48xf32> to vector<8x8x48xf32>
    %159 = arith.mulf %158, %152 : vector<8x8x48xf32>
    %160 = arith.subf %156, %159 : vector<8x8x48xf32>
    %161 = vector.shape_cast %143 : vector<8x48xf32> to vector<1x8x48xf32>
    %162 = vector.broadcast %161 : vector<1x8x48xf32> to vector<8x8x48xf32>
    %163 = arith.mulf %162, %152 : vector<8x8x48xf32>
    %164 = arith.addf %140, %163 : vector<8x8x48xf32>
    %165 = vector.shape_cast %146 : vector<8x48xf32> to vector<1x8x48xf32>
    %166 = vector.broadcast %165 : vector<1x8x48xf32> to vector<8x8x48xf32>
    %167 = arith.mulf %166, %149 : vector<8x8x48xf32>
    %168 = arith.addf %164, %167 : vector<8x8x48xf32>
    %c6_i32 = arith.constant 6 : i32
    %169 = arith.index_cast %c6_i32 : i32 to index
    %c0_59 = arith.constant 0 : index
    %c0_60 = arith.constant 0 : index
    %170 = vector.load %arg0[%169, %c0_59, %c0_60] : memref<8x8x48xf32, #tpu.memory_space<vmem>>, vector<1x8x48xf32>
    %171 = vector.shape_cast %170 : vector<1x8x48xf32> to vector<8x48xf32>
    %172 = arith.index_cast %c6_i32 : i32 to index
    %c0_61 = arith.constant 0 : index
    %c0_62 = arith.constant 0 : index
    %173 = vector.load %arg1[%172, %c0_61, %c0_62] : memref<8x8x48xf32, #tpu.memory_space<vmem>>, vector<1x8x48xf32>
    %174 = vector.shape_cast %173 : vector<1x8x48xf32> to vector<8x48xf32>
    %175 = arith.index_cast %c6_i32 : i32 to index
    %c0_63 = arith.constant 0 : index
    %c0_64 = arith.constant 0 : index
    %c0_65 = arith.constant 0 : index
    %176 = vector.load %arg2[%175, %c0_63, %c0_64, %c0_65] : memref<8x8x8x48xf32, #tpu.memory_space<vmem>>, vector<1x8x8x48xf32>
    %177 = vector.shape_cast %176 : vector<1x8x8x48xf32> to vector<8x8x48xf32>
    %178 = arith.index_cast %c6_i32 : i32 to index
    %c0_66 = arith.constant 0 : index
    %c0_67 = arith.constant 0 : index
    %c0_68 = arith.constant 0 : index
    %179 = vector.load %arg3[%178, %c0_66, %c0_67, %c0_68] : memref<8x8x8x48xf32, #tpu.memory_space<vmem>>, vector<1x8x8x48xf32>
    %180 = vector.shape_cast %179 : vector<1x8x8x48xf32> to vector<8x8x48xf32>
    %181 = vector.shape_cast %171 : vector<8x48xf32> to vector<1x8x48xf32>
    %182 = vector.broadcast %181 : vector<1x8x48xf32> to vector<8x8x48xf32>
    %183 = arith.mulf %182, %177 : vector<8x8x48xf32>
    %184 = arith.addf %160, %183 : vector<8x8x48xf32>
    %185 = vector.shape_cast %174 : vector<8x48xf32> to vector<1x8x48xf32>
    %186 = vector.broadcast %185 : vector<1x8x48xf32> to vector<8x8x48xf32>
    %187 = arith.mulf %186, %180 : vector<8x8x48xf32>
    %188 = arith.subf %184, %187 : vector<8x8x48xf32>
    %189 = vector.shape_cast %171 : vector<8x48xf32> to vector<1x8x48xf32>
    %190 = vector.broadcast %189 : vector<1x8x48xf32> to vector<8x8x48xf32>
    %191 = arith.mulf %190, %180 : vector<8x8x48xf32>
    %192 = arith.addf %168, %191 : vector<8x8x48xf32>
    %193 = vector.shape_cast %174 : vector<8x48xf32> to vector<1x8x48xf32>
    %194 = vector.broadcast %193 : vector<1x8x48xf32> to vector<8x8x48xf32>
    %195 = arith.mulf %194, %177 : vector<8x8x48xf32>
    %196 = arith.addf %192, %195 : vector<8x8x48xf32>
    %c7_i32 = arith.constant 7 : i32
    %197 = arith.index_cast %c7_i32 : i32 to index
    %c0_69 = arith.constant 0 : index
    %c0_70 = arith.constant 0 : index
    %198 = vector.load %arg0[%197, %c0_69, %c0_70] : memref<8x8x48xf32, #tpu.memory_space<vmem>>, vector<1x8x48xf32>
    %199 = vector.shape_cast %198 : vector<1x8x48xf32> to vector<8x48xf32>
    %200 = arith.index_cast %c7_i32 : i32 to index
    %c0_71 = arith.constant 0 : index
    %c0_72 = arith.constant 0 : index
    %201 = vector.load %arg1[%200, %c0_71, %c0_72] : memref<8x8x48xf32, #tpu.memory_space<vmem>>, vector<1x8x48xf32>
    %202 = vector.shape_cast %201 : vector<1x8x48xf32> to vector<8x48xf32>
    %203 = arith.index_cast %c7_i32 : i32 to index
    %c0_73 = arith.constant 0 : index
    %c0_74 = arith.constant 0 : index
    %c0_75 = arith.constant 0 : index
    %204 = vector.load %arg2[%203, %c0_73, %c0_74, %c0_75] : memref<8x8x8x48xf32, #tpu.memory_space<vmem>>, vector<1x8x8x48xf32>
    %205 = vector.shape_cast %204 : vector<1x8x8x48xf32> to vector<8x8x48xf32>
    %206 = arith.index_cast %c7_i32 : i32 to index
    %c0_76 = arith.constant 0 : index
    %c0_77 = arith.constant 0 : index
    %c0_78 = arith.constant 0 : index
    %207 = vector.load %arg3[%206, %c0_76, %c0_77, %c0_78] : memref<8x8x8x48xf32, #tpu.memory_space<vmem>>, vector<1x8x8x48xf32>
    %208 = vector.shape_cast %207 : vector<1x8x8x48xf32> to vector<8x8x48xf32>
    %209 = vector.shape_cast %199 : vector<8x48xf32> to vector<1x8x48xf32>
    %210 = vector.broadcast %209 : vector<1x8x48xf32> to vector<8x8x48xf32>
    %211 = arith.mulf %210, %205 : vector<8x8x48xf32>
    %212 = arith.addf %188, %211 : vector<8x8x48xf32>
    %213 = vector.shape_cast %202 : vector<8x48xf32> to vector<1x8x48xf32>
    %214 = vector.broadcast %213 : vector<1x8x48xf32> to vector<8x8x48xf32>
    %215 = arith.mulf %214, %208 : vector<8x8x48xf32>
    %216 = arith.subf %212, %215 : vector<8x8x48xf32>
    %217 = vector.shape_cast %199 : vector<8x48xf32> to vector<1x8x48xf32>
    %218 = vector.broadcast %217 : vector<1x8x48xf32> to vector<8x8x48xf32>
    %219 = arith.mulf %218, %208 : vector<8x8x48xf32>
    %220 = arith.addf %196, %219 : vector<8x8x48xf32>
    %221 = vector.shape_cast %202 : vector<8x48xf32> to vector<1x8x48xf32>
    %222 = vector.broadcast %221 : vector<1x8x48xf32> to vector<8x8x48xf32>
    %223 = arith.mulf %222, %205 : vector<8x8x48xf32>
    %224 = arith.addf %220, %223 : vector<8x8x48xf32>
    %c8_i32 = arith.constant 8 : i32
    %c0_79 = arith.constant 0 : index
    %c0_80 = arith.constant 0 : index
    %c0_81 = arith.constant 0 : index
    %225 = vector.load %arg4[%c0_79, %c0_80, %c0_81] : memref<8x8x48xf32, #tpu.memory_space<vmem>>, vector<8x8x48xf32>
    tpu.vector_store %arg4[%c0_79, %c0_80, %c0_81], %216 {strides = array<i32>} : memref<8x8x48xf32, #tpu.memory_space<vmem>>, vector<8x8x48xf32>,
    %c0_82 = arith.constant 0 : index
    %c0_83 = arith.constant 0 : index
    %c0_84 = arith.constant 0 : index
    %226 = vector.load %arg5[%c0_82, %c0_83, %c0_84] : memref<8x8x48xf32, #tpu.memory_space<vmem>>, vector<8x8x48xf32>
    tpu.vector_store %arg5[%c0_82, %c0_83, %c0_84], %224 {strides = array<i32>} : memref<8x8x48xf32, #tpu.memory_space<vmem>>, vector<8x8x48xf32>,
    return
  }
}

</mosaic_0001>

<llo_original>
// kernel: tpu_custom_call.1
$region0: #{tpu_custom_call.1}
  #allocation0 [shape = 'u32[]', space=smem, size = 0x4, offset = 0x4, fixed_abs, tag = 'smem constant byte address 0x4 - core index']
  #allocation1 [shape = 'u32[144,128]{1,0:T(1,128)}', space=vmem, size = 0x12000, scoped, tag = 'internal scratch']
  %s0 = inlined_call_operand.hbm [shape: f32[8,8,48], index: 0, kind: input, shape index: {}]
  %s1 = inlined_call_operand.hbm [shape: f32[8,8,48], index: 1, kind: input, shape index: {}]
  %s2 = inlined_call_operand.hbm [shape: f32[8,8,8,48], index: 2, kind: input, shape index: {}]
  %s3 = inlined_call_operand.hbm [shape: f32[8,8,8,48], index: 3, kind: input, shape index: {}]
  %s4 = inlined_call_operand.hbm [shape: f32[8,8,48], index: 4, kind: output, shape index: {0}]
  %s5 = inlined_call_operand.hbm [shape: f32[8,8,48], index: 5, kind: output, shape index: {1}]
  %6 = xla_tuple %s4, %s5
  %s7 = sld [smem:[#allocation0]]
  $region50: #{tpu_custom_call.1} parent=0
    _
  %s9 = ssub.s32 1, %s7
  %s10 = scalar_select 0, %s9, %s7
  $region1: #{tpu_custom_call.1} parent=0
    #allocation2 [shape = 'u8[32768]{0}', space=vmem, size = 0x8000, scoped, tag = 'input window, operand 0, single buffered']
    #allocation3 [shape = 's32[1]{0}', space=sflag, size = 0x4, scoped, tag = 'scoped memory for tpu_custom_call.1']
    #allocation4 [shape = 's32[1]{0}', space=sflag, size = 0x4, scoped, tag = 'scoped memory for tpu_custom_call.1']
    #allocation5 [shape = 'u8[32768]{0}', space=vmem, size = 0x8000, scoped, tag = 'input window, operand 1, single buffered']
    #allocation6 [shape = 's32[1]{0}', space=sflag, size = 0x4, scoped, tag = 'scoped memory for tpu_custom_call.1']
    #allocation7 [shape = 'u8[262144]{0}', space=vmem, size = 0x40000, scoped, tag = 'input window, operand 2, single buffered']
    #allocation8 [shape = 'u8[262144]{0}', space=vmem, size = 0x40000, scoped, tag = 'input window, operand 3, single buffered']
    #allocation9 [shape = 's32[1]{0}', space=sflag, size = 0x4, scoped, tag = 'scoped memory for tpu_custom_call.1']
    #allocation10 [shape = 'u8[32768]{0}', space=vmem, size = 0x8000, scoped, tag = 'output window, operand 0, single buffered']
    #allocation11 [shape = 'u8[32768]{0}', space=vmem, size = 0x8000, scoped, tag = 'output window, operand 1, single buffered']
    #allocation12 [shape = 's32[1]{0}', space=sflag, size = 0x4, scoped, tag = 'scoped memory for tpu_custom_call.1']
    %11 = vsyncpa [#allocation3], 0
    %12 = vsyncpa [#allocation6], 0
    %13 = vsyncpa [#allocation9], 0
    %14 = vsyncpa [#allocation4], 0
    %15 = vsyncpa [#allocation12], 0
    // Predicated region
    $region2: #{tpu_custom_call.1} parent=1 // pred_check
      _
    $region3: #{tpu_custom_call.1} parent=1 // pred_check_branch
      %17 = sbr.rel (0) target = $region5
    $region4: #{tpu_custom_call.1} parent=1 // pred_region
      %s19 = ssub.s32 1024, 1024
      %20 = vsyncadd [#allocation3], %s19
      %s21 = sshll.u32 [#allocation2], 4
      %s22 = int_to_ptr.vmem [resolvable:$true] %s21
      %27 = dma.hbm_to_vmem [thread:$0]  %s0, 1024, %s22, [#allocation3], 128, 128, 8
    $region5: #{tpu_custom_call.1} parent=1 // pred_fallthru
      _
    // Predicated region
    $region6: #{tpu_custom_call.1} parent=1 // pred_check
      _
    $region7: #{tpu_custom_call.1} parent=1 // pred_check_branch
      %29 = sbr.rel (0) target = $region9
    $region8: #{tpu_custom_call.1} parent=1 // pred_region
      %s31 = ssub.s32 1024, 1024
      %32 = vsyncadd [#allocation6], %s31
      %s33 = sshll.u32 [#allocation5], 4
      %s34 = int_to_ptr.vmem [resolvable:$true] %s33
      %39 = dma.hbm_to_vmem [thread:$0]  %s1, 1024, %s34, [#allocation6], 128, 128, 8
    $region9: #{tpu_custom_call.1} parent=1 // pred_fallthru
      _
    // Predicated region
    $region10: #{tpu_custom_call.1} parent=1 // pred_check
      _
    $region11: #{tpu_custom_call.1} parent=1 // pred_check_branch
      %41 = sbr.rel (0) target = $region13
    $region12: #{tpu_custom_call.1} parent=1 // pred_region
      %s43 = ssub.s32 8192, 8192
      %44 = vsyncadd [#allocation6], %s43
      %s45 = sshll.u32 [#allocation7], 4
      %s46 = int_to_ptr.vmem [resolvable:$true] %s45
      %51 = dma.hbm_to_vmem [thread:$0]  %s2, 8192, %s46, [#allocation6], 128, 128, 8
    $region13: #{tpu_custom_call.1} parent=1 // pred_fallthru
      _
    // Predicated region
    $region14: #{tpu_custom_call.1} parent=1 // pred_check
      _
    $region15: #{tpu_custom_call.1} parent=1 // pred_check_branch
      %53 = sbr.rel (0) target = $region17
    $region16: #{tpu_custom_call.1} parent=1 // pred_region
      %s55 = ssub.s32 8192, 8192
      %56 = vsyncadd [#allocation9], %s55
      %s57 = sshll.u32 [#allocation8], 4
      %s58 = int_to_ptr.vmem [resolvable:$true] %s57
      %63 = dma.hbm_to_vmem [thread:$0]  %s3, 8192, %s58, [#allocation9], 128, 128, 8
    $region17: #{tpu_custom_call.1} parent=1 // pred_fallthru
      _
    // Predicated region
    $region18: #{tpu_custom_call.1} parent=1 // pred_check
      _
    $region19: #{tpu_custom_call.1} parent=1 // pred_check_branch
      %65 = sbr.rel (0) target = $region21
    $region20: #{tpu_custom_call.1} parent=1 // pred_region
      %66 = dma.done [#allocation3], 1024
    $region21: #{tpu_custom_call.1} parent=1 // pred_fallthru
      _
    // Predicated region
    $region22: #{tpu_custom_call.1} parent=1 // pred_check
      _
    $region23: #{tpu_custom_call.1} parent=1 // pred_check_branch
      %68 = sbr.rel (0) target = $region25
    $region24: #{tpu_custom_call.1} parent=1 // pred_region
      %69 = dma.done [#allocation6], 1024
    $region25: #{tpu_custom_call.1} parent=1 // pred_fallthru
      _
    // Predicated region
    $region26: #{tpu_custom_call.1} parent=1 // pred_check
      _
    $region27: #{tpu_custom_call.1} parent=1 // pred_check_branch
      %71 = sbr.rel (0) target = $region29
    $region28: #{tpu_custom_call.1} parent=1 // pred_region
      %72 = dma.done [#allocation6], 8192
    $region29: #{tpu_custom_call.1} parent=1 // pred_fallthru
      _
    // Predicated region
    $region30: #{tpu_custom_call.1} parent=1 // pred_check
      _
    $region31: #{tpu_custom_call.1} parent=1 // pred_check_branch
      %74 = sbr.rel (0) target = $region33
    $region32: #{tpu_custom_call.1} parent=1 // pred_region
      %75 = dma.done [#allocation9], 8192
    $region33: #{tpu_custom_call.1} parent=1 // pred_fallthru
      _
    %v76 = vld [vmem:[#allocation2] sm:$0xff]
    %v77 = vld [vmem:[#allocation5] sm:$0xff]
    %v78 = vld [vmem:[#allocation7] sm:$0xff]
    %v79 = vld [vmem:[#allocation7 + $0x8] sm:$0xff]
    %v80 = vld [vmem:[#allocation7 + $0x10] sm:$0xff]
    %v81 = vld [vmem:[#allocation7 + $0x18] sm:$0xff]
    %v82 = vld [vmem:[#allocation7 + $0x20] sm:$0xff]
    %v83 = vld [vmem:[#allocation7 + $0x28] sm:$0xff]
    %v84 = vld [vmem:[#allocation7 + $0x30] sm:$0xff]
    %v85 = vld [vmem:[#allocation7 + $0x38] sm:$0xff]
    %v86 = vld [vmem:[#allocation8] sm:$0xff]
    %v87 = vld [vmem:[#allocation8 + $0x8] sm:$0xff]
    %v88 = vld [vmem:[#allocation8 + $0x10] sm:$0xff]
    %v89 = vld [vmem:[#allocation8 + $0x18] sm:$0xff]
    %v90 = vld [vmem:[#allocation8 + $0x20] sm:$0xff]
    %v91 = vld [vmem:[#allocation8 + $0x28] sm:$0xff]
    %v92 = vld [vmem:[#allocation8 + $0x30] sm:$0xff]
    %v93 = vld [vmem:[#allocation8 + $0x38] sm:$0xff]
    %v94 = vmul.f32 %v76, %v78
    %v95 = vmul.f32 %v76, %v79
    %v96 = vmul.f32 %v76, %v80
    %v97 = vmul.f32 %v76, %v81
    %v98 = vmul.f32 %v76, %v82
    %v99 = vmul.f32 %v76, %v83
    %v100 = vmul.f32 %v76, %v84
    %v101 = vmul.f32 %v76, %v85
    %v102 = vadd.f32 %v94, 0.0
    %v103 = vadd.f32 %v95, 0.0
    %v104 = vadd.f32 %v96, 0.0
    %v105 = vadd.f32 %v97, 0.0
    %v106 = vadd.f32 %v98, 0.0
    %v107 = vadd.f32 %v99, 0.0
    %v108 = vadd.f32 %v100, 0.0
    %v109 = vadd.f32 %v101, 0.0
    %v110 = vmul.f32 %v77, %v86
    %v111 = vmul.f32 %v77, %v87
    %v112 = vmul.f32 %v77, %v88
    %v113 = vmul.f32 %v77, %v89
    %v114 = vmul.f32 %v77, %v90
    %v115 = vmul.f32 %v77, %v91
    %v116 = vmul.f32 %v77, %v92
    %v117 = vmul.f32 %v77, %v93
    %v118 = vsub.f32 %v102, %v110
    %v119 = vsub.f32 %v103, %v111
    %v120 = vsub.f32 %v104, %v112
    %v121 = vsub.f32 %v105, %v113
    %v122 = vsub.f32 %v106, %v114
    %v123 = vsub.f32 %v107, %v115
    %v124 = vsub.f32 %v108, %v116
    %v125 = vsub.f32 %v109, %v117
    %v126 = vmul.f32 %v76, %v86
    %v127 = vmul.f32 %v76, %v87
    %v128 = vmul.f32 %v76, %v88
    %v129 = vmul.f32 %v76, %v89
    %v130 = vmul.f32 %v76, %v90
    %v131 = vmul.f32 %v76, %v91
    %v132 = vmul.f32 %v76, %v92
    %v133 = vmul.f32 %v76, %v93
    %v134 = vadd.f32 %v126, 0.0
    %v135 = vadd.f32 %v127, 0.0
    %v136 = vadd.f32 %v128, 0.0
    %v137 = vadd.f32 %v129, 0.0
    %v138 = vadd.f32 %v130, 0.0
    %v139 = vadd.f32 %v131, 0.0
    %v140 = vadd.f32 %v132, 0.0
    %v141 = vadd.f32 %v133, 0.0
    %v142 = vmul.f32 %v77, %v78
    %v143 = vmul.f32 %v77, %v79
    %v144 = vmul.f32 %v77, %v80
    %v145 = vmul.f32 %v77, %v81
    %v146 = vmul.f32 %v77, %v82
    %v147 = vmul.f32 %v77, %v83
    %v148 = vmul.f32 %v77, %v84
    %v149 = vmul.f32 %v77, %v85
    %v150 = vadd.f32 %v134, %v142
    %v151 = vadd.f32 %v135, %v143
    %v152 = vadd.f32 %v136, %v144
    %v153 = vadd.f32 %v137, %v145
    %v154 = vadd.f32 %v138, %v146
    %v155 = vadd.f32 %v139, %v147
    %v156 = vadd.f32 %v140, %v148
    %v157 = vadd.f32 %v141, %v149
    %s158 = scalar_lea.vmem [#allocation2], 8
    %v159 = vld [vmem:[%s158] sm:$0xff]
    %s160 = scalar_lea.vmem [#allocation5], 8
    %v161 = vld [vmem:[%s160] sm:$0xff]
    %s162 = scalar_lea.vmem [#allocation7], 64
    %v163 = vld [vmem:[%s162] sm:$0xff]
    %v164 = vld [vmem:[%s162 + $0x8] sm:$0xff]
    %v165 = vld [vmem:[%s162 + $0x10] sm:$0xff]
    %v166 = vld [vmem:[%s162 + $0x18] sm:$0xff]
    %v167 = vld [vmem:[%s162 + $0x20] sm:$0xff]
    %v168 = vld [vmem:[%s162 + $0x28] sm:$0xff]
    %v169 = vld [vmem:[%s162 + $0x30] sm:$0xff]
    %v170 = vld [vmem:[%s162 + $0x38] sm:$0xff]
    %s171 = scalar_lea.vmem [#allocation8], 64
    %v172 = vld [vmem:[%s171] sm:$0xff]
    %v173 = vld [vmem:[%s171 + $0x8] sm:$0xff]
    %v174 = vld [vmem:[%s171 + $0x10] sm:$0xff]
    %v175 = vld [vmem:[%s171 + $0x18] sm:$0xff]
    %v176 = vld [vmem:[%s171 + $0x20] sm:$0xff]
    %v177 = vld [vmem:[%s171 + $0x28] sm:$0xff]
    %v178 = vld [vmem:[%s171 + $0x30] sm:$0xff]
    %v179 = vld [vmem:[%s171 + $0x38] sm:$0xff]
    %v180 = vmul.f32 %v159, %v163
    %v181 = vmul.f32 %v159, %v164
    %v182 = vmul.f32 %v159, %v165
    %v183 = vmul.f32 %v159, %v166
    %v184 = vmul.f32 %v159, %v167
    %v185 = vmul.f32 %v159, %v168
    %v186 = vmul.f32 %v159, %v169
    %v187 = vmul.f32 %v159, %v170
    %v188 = vadd.f32 %v118, %v180
    %v189 = vadd.f32 %v119, %v181
    %v190 = vadd.f32 %v120, %v182
    %v191 = vadd.f32 %v121, %v183
    %v192 = vadd.f32 %v122, %v184
    %v193 = vadd.f32 %v123, %v185
    %v194 = vadd.f32 %v124, %v186
    %v195 = vadd.f32 %v125, %v187
    %v196 = vmul.f32 %v161, %v172
    %v197 = vmul.f32 %v161, %v173
    %v198 = vmul.f32 %v161, %v174
    %v199 = vmul.f32 %v161, %v175
    %v200 = vmul.f32 %v161, %v176
    %v201 = vmul.f32 %v161, %v177
    %v202 = vmul.f32 %v161, %v178
    %v203 = vmul.f32 %v161, %v179
    %v204 = vsub.f32 %v188, %v196
    %v205 = vsub.f32 %v189, %v197
    %v206 = vsub.f32 %v190, %v198
    %v207 = vsub.f32 %v191, %v199
    %v208 = vsub.f32 %v192, %v200
    %v209 = vsub.f32 %v193, %v201
    %v210 = vsub.f32 %v194, %v202
    %v211 = vsub.f32 %v195, %v203
    %v212 = vmul.f32 %v159, %v172
    %v213 = vmul.f32 %v159, %v173
    %v214 = vmul.f32 %v159, %v174
    %v215 = vmul.f32 %v159, %v175
    %v216 = vmul.f32 %v159, %v176
    %v217 = vmul.f32 %v159, %v177
    %v218 = vmul.f32 %v159, %v178
    %v219 = vmul.f32 %v159, %v179
    %v220 = vadd.f32 %v150, %v212
    %v221 = vadd.f32 %v151, %v213
    %v222 = vadd.f32 %v152, %v214
    %v223 = vadd.f32 %v153, %v215
    %v224 = vadd.f32 %v154, %v216
    %v225 = vadd.f32 %v155, %v217
    %v226 = vadd.f32 %v156, %v218
    %v227 = vadd.f32 %v157, %v219
    %v228 = vmul.f32 %v161, %v163
    %v229 = vmul.f32 %v161, %v164
    %v230 = vmul.f32 %v161, %v165
    %v231 = vmul.f32 %v161, %v166
    %v232 = vmul.f32 %v161, %v167
    %v233 = vmul.f32 %v161, %v168
    %v234 = vmul.f32 %v161, %v169
    %v235 = vmul.f32 %v161, %v170
    %v236 = vadd.f32 %v220, %v228
    %v237 = vadd.f32 %v221, %v229
    %v238 = vadd.f32 %v222, %v230
    %v239 = vadd.f32 %v223, %v231
    %v240 = vadd.f32 %v224, %v232
    %v241 = vadd.f32 %v225, %v233
    %v242 = vadd.f32 %v226, %v234
    %v243 = vadd.f32 %v227, %v235
    %s244 = scalar_lea.vmem [#allocation2], 16
    %v245 = vld [vmem:[%s244] sm:$0xff]
    %s246 = scalar_lea.vmem [#allocation5], 16
    %v247 = vld [vmem:[%s246] sm:$0xff]
    %s248 = scalar_lea.vmem [#allocation7], 128
    %v249 = vld [vmem:[%s248] sm:$0xff]
    %v250 = vld [vmem:[%s248 + $0x8] sm:$0xff]
    %v251 = vld [vmem:[%s248 + $0x10] sm:$0xff]
    %v252 = vld [vmem:[%s248 + $0x18] sm:$0xff]
    %v253 = vld [vmem:[%s248 + $0x20] sm:$0xff]
    %v254 = vld [vmem:[%s248 + $0x28] sm:$0xff]
    %v255 = vld [vmem:[%s248 + $0x30] sm:$0xff]
    %v256 = vld [vmem:[%s248 + $0x38] sm:$0xff]
    %s257 = scalar_lea.vmem [#allocation8], 128
    %v258 = vld [vmem:[%s257] sm:$0xff]
    %v259 = vld [vmem:[%s257 + $0x8] sm:$0xff]
    %v260 = vld [vmem:[%s257 + $0x10] sm:$0xff]
    %v261 = vld [vmem:[%s257 + $0x18] sm:$0xff]
    %v262 = vld [vmem:[%s257 + $0x20] sm:$0xff]
    %v263 = vld [vmem:[%s257 + $0x28] sm:$0xff]
    %v264 = vld [vmem:[%s257 + $0x30] sm:$0xff]
    %v265 = vld [vmem:[%s257 + $0x38] sm:$0xff]
    %v266 = vmul.f32 %v245, %v249
    %v267 = vmul.f32 %v245, %v250
    %v268 = vmul.f32 %v245, %v251
    %v269 = vmul.f32 %v245, %v252
    %v270 = vmul.f32 %v245, %v253
    %v271 = vmul.f32 %v245, %v254
    %v272 = vmul.f32 %v245, %v255
    %v273 = vmul.f32 %v245, %v256
    %v274 = vadd.f32 %v204, %v266
    %v275 = vadd.f32 %v205, %v267
    %v276 = vadd.f32 %v206, %v268
    %v277 = vadd.f32 %v207, %v269
    %v278 = vadd.f32 %v208, %v270
    %v279 = vadd.f32 %v209, %v271
    %v280 = vadd.f32 %v210, %v272
    %v281 = vadd.f32 %v211, %v273
    %v282 = vmul.f32 %v247, %v258
    %v283 = vmul.f32 %v247, %v259
    %v284 = vmul.f32 %v247, %v260
    %v285 = vmul.f32 %v247, %v261
    %v286 = vmul.f32 %v247, %v262
    %v287 = vmul.f32 %v247, %v263
    %v288 = vmul.f32 %v247, %v264
    %v289 = vmul.f32 %v247, %v265
    %v290 = vsub.f32 %v274, %v282
    %v291 = vsub.f32 %v275, %v283
    %v292 = vsub.f32 %v276, %v284
    %v293 = vsub.f32 %v277, %v285
    %v294 = vsub.f32 %v278, %v286
    %v295 = vsub.f32 %v279, %v287
    %v296 = vsub.f32 %v280, %v288
    %v297 = vsub.f32 %v281, %v289
    %v298 = vmul.f32 %v245, %v258
    %v299 = vmul.f32 %v245, %v259
    %v300 = vmul.f32 %v245, %v260
    %v301 = vmul.f32 %v245, %v261
    %v302 = vmul.f32 %v245, %v262
    %v303 = vmul.f32 %v245, %v263
    %v304 = vmul.f32 %v245, %v264
    %v305 = vmul.f32 %v245, %v265
    %v306 = vadd.f32 %v236, %v298
    %v307 = vadd.f32 %v237, %v299
    %v308 = vadd.f32 %v238, %v300
    %v309 = vadd.f32 %v239, %v301
    %v310 = vadd.f32 %v240, %v302
    %v311 = vadd.f32 %v241, %v303
    %v312 = vadd.f32 %v242, %v304
    %v313 = vadd.f32 %v243, %v305
    %v314 = vmul.f32 %v247, %v249
    %v315 = vmul.f32 %v247, %v250
    %v316 = vmul.f32 %v247, %v251
    %v317 = vmul.f32 %v247, %v252
    %v318 = vmul.f32 %v247, %v253
    %v319 = vmul.f32 %v247, %v254
    %v320 = vmul.f32 %v247, %v255
    %v321 = vmul.f32 %v247, %v256
    %v322 = vadd.f32 %v306, %v314
    %v323 = vadd.f32 %v307, %v315
    %v324 = vadd.f32 %v308, %v316
    %v325 = vadd.f32 %v309, %v317
    %v326 = vadd.f32 %v310, %v318
    %v327 = vadd.f32 %v311, %v319
    %v328 = vadd.f32 %v312, %v320
    %v329 = vadd.f32 %v313, %v321
    %s330 = scalar_lea.vmem [#allocation2], 24
    %v331 = vld [vmem:[%s330] sm:$0xff]
    %s332 = scalar_lea.vmem [#allocation5], 24
    %v333 = vld [vmem:[%s332] sm:$0xff]
    %s334 = scalar_lea.vmem [#allocation7], 192
    %v335 = vld [vmem:[%s334] sm:$0xff]
    %v336 = vld [vmem:[%s334 + $0x8] sm:$0xff]
    %v337 = vld [vmem:[%s334 + $0x10] sm:$0xff]
    %v338 = vld [vmem:[%s334 + $0x18] sm:$0xff]
    %v339 = vld [vmem:[%s334 + $0x20] sm:$0xff]
    %v340 = vld [vmem:[%s334 + $0x28] sm:$0xff]
    %v341 = vld [vmem:[%s334 + $0x30] sm:$0xff]
    %v342 = vld [vmem:[%s334 + $0x38] sm:$0xff]
    %s343 = scalar_lea.vmem [#allocation8], 192
    %v344 = vld [vmem:[%s343] sm:$0xff]
    %v345 = vld [vmem:[%s343 + $0x8] sm:$0xff]
    %v346 = vld [vmem:[%s343 + $0x10] sm:$0xff]
    %v347 = vld [vmem:[%s343 + $0x18] sm:$0xff]
    %v348 = vld [vmem:[%s343 + $0x20] sm:$0xff]
    %v349 = vld [vmem:[%s343 + $0x28] sm:$0xff]
    %v350 = vld [vmem:[%s343 + $0x30] sm:$0xff]
    %v351 = vld [vmem:[%s343 + $0x38] sm:$0xff]
    %v352 = vmul.f32 %v331, %v335
    %v353 = vmul.f32 %v331, %v336
    %v354 = vmul.f32 %v331, %v337
    %v355 = vmul.f32 %v331, %v338
    %v356 = vmul.f32 %v331, %v339
    %v357 = vmul.f32 %v331, %v340
    %v358 = vmul.f32 %v331, %v341
    %v359 = vmul.f32 %v331, %v342
    %v360 = vadd.f32 %v290, %v352
    %v361 = vadd.f32 %v291, %v353
    %v362 = vadd.f32 %v292, %v354
    %v363 = vadd.f32 %v293, %v355
    %v364 = vadd.f32 %v294, %v356
    %v365 = vadd.f32 %v295, %v357
    %v366 = vadd.f32 %v296, %v358
    %v367 = vadd.f32 %v297, %v359
    %v368 = vmul.f32 %v333, %v344
    %v369 = vmul.f32 %v333, %v345
    %v370 = vmul.f32 %v333, %v346
    %v371 = vmul.f32 %v333, %v347
    %v372 = vmul.f32 %v333, %v348
    %v373 = vmul.f32 %v333, %v349
    %v374 = vmul.f32 %v333, %v350
    %v375 = vmul.f32 %v333, %v351
    %v376 = vsub.f32 %v360, %v368
    %v377 = vsub.f32 %v361, %v369
    %v378 = vsub.f32 %v362, %v370
    %v379 = vsub.f32 %v363, %v371
    %v380 = vsub.f32 %v364, %v372
    %v381 = vsub.f32 %v365, %v373
    %v382 = vsub.f32 %v366, %v374
    %v383 = vsub.f32 %v367, %v375
    %v384 = vmul.f32 %v331, %v344
    %v385 = vmul.f32 %v331, %v345
    %v386 = vmul.f32 %v331, %v346
    %v387 = vmul.f32 %v331, %v347
    %v388 = vmul.f32 %v331, %v348
    %v389 = vmul.f32 %v331, %v349
    %v390 = vmul.f32 %v331, %v350
    %v391 = vmul.f32 %v331, %v351
    %v392 = vadd.f32 %v322, %v384
    %v393 = vadd.f32 %v323, %v385
    %v394 = vadd.f32 %v324, %v386
    %v395 = vadd.f32 %v325, %v387
    %v396 = vadd.f32 %v326, %v388
    %v397 = vadd.f32 %v327, %v389
    %v398 = vadd.f32 %v328, %v390
    %v399 = vadd.f32 %v329, %v391
    %v400 = vmul.f32 %v333, %v335
    %v401 = vmul.f32 %v333, %v336
    %v402 = vmul.f32 %v333, %v337
    %v403 = vmul.f32 %v333, %v338
    %v404 = vmul.f32 %v333, %v339
    %v405 = vmul.f32 %v333, %v340
    %v406 = vmul.f32 %v333, %v341
    %v407 = vmul.f32 %v333, %v342
    %v408 = vadd.f32 %v392, %v400
    %v409 = vadd.f32 %v393, %v401
    %v410 = vadd.f32 %v394, %v402
    %v411 = vadd.f32 %v395, %v403
    %v412 = vadd.f32 %v396, %v404
    %v413 = vadd.f32 %v397, %v405
    %v414 = vadd.f32 %v398, %v406
    %v415 = vadd.f32 %v399, %v407
    %s416 = scalar_lea.vmem [#allocation2], 32
    %v417 = vld [vmem:[%s416] sm:$0xff]
    %s418 = scalar_lea.vmem [#allocation5], 32
    %v419 = vld [vmem:[%s418] sm:$0xff]
    %s420 = scalar_lea.vmem [#allocation7], 256
    %v421 = vld [vmem:[%s420] sm:$0xff]
    %v422 = vld [vmem:[%s420 + $0x8] sm:$0xff]
    %v423 = vld [vmem:[%s420 + $0x10] sm:$0xff]
    %v424 = vld [vmem:[%s420 + $0x18] sm:$0xff]
    %v425 = vld [vmem:[%s420 + $0x20] sm:$0xff]
    %v426 = vld [vmem:[%s420 + $0x28] sm:$0xff]
    %v427 = vld [vmem:[%s420 + $0x30] sm:$0xff]
    %v428 = vld [vmem:[%s420 + $0x38] sm:$0xff]
    %s429 = scalar_lea.vmem [#allocation8], 256
    %v430 = vld [vmem:[%s429] sm:$0xff]
    %v431 = vld [vmem:[%s429 + $0x8] sm:$0xff]
    %v432 = vld [vmem:[%s429 + $0x10] sm:$0xff]
    %v433 = vld [vmem:[%s429 + $0x18] sm:$0xff]
    %v434 = vld [vmem:[%s429 + $0x20] sm:$0xff]
    %v435 = vld [vmem:[%s429 + $0x28] sm:$0xff]
    %v436 = vld [vmem:[%s429 + $0x30] sm:$0xff]
    %v437 = vld [vmem:[%s429 + $0x38] sm:$0xff]
    %v438 = vmul.f32 %v417, %v421
    %v439 = vmul.f32 %v417, %v422
    %v440 = vmul.f32 %v417, %v423
    %v441 = vmul.f32 %v417, %v424
    %v442 = vmul.f32 %v417, %v425
    %v443 = vmul.f32 %v417, %v426
    %v444 = vmul.f32 %v417, %v427
    %v445 = vmul.f32 %v417, %v428
    %v446 = vadd.f32 %v376, %v438
    %v447 = vadd.f32 %v377, %v439
    %v448 = vadd.f32 %v378, %v440
    %v449 = vadd.f32 %v379, %v441
    %v450 = vadd.f32 %v380, %v442
    %v451 = vadd.f32 %v381, %v443
    %v452 = vadd.f32 %v382, %v444
    %v453 = vadd.f32 %v383, %v445
    %v454 = vmul.f32 %v419, %v430
    %v455 = vmul.f32 %v419, %v431
    %v456 = vmul.f32 %v419, %v432
    %v457 = vmul.f32 %v419, %v433
    %v458 = vmul.f32 %v419, %v434
    %v459 = vmul.f32 %v419, %v435
    %v460 = vmul.f32 %v419, %v436
    %v461 = vmul.f32 %v419, %v437
    %v462 = vsub.f32 %v446, %v454
    %v463 = vsub.f32 %v447, %v455
    %v464 = vsub.f32 %v448, %v456
    %v465 = vsub.f32 %v449, %v457
    %v466 = vsub.f32 %v450, %v458
    %v467 = vsub.f32 %v451, %v459
    %v468 = vsub.f32 %v452, %v460
    %v469 = vsub.f32 %v453, %v461
    %v470 = vmul.f32 %v417, %v430
    %v471 = vmul.f32 %v417, %v431
    %v472 = vmul.f32 %v417, %v432
    %v473 = vmul.f32 %v417, %v433
    %v474 = vmul.f32 %v417, %v434
    %v475 = vmul.f32 %v417, %v435
    %v476 = vmul.f32 %v417, %v436
    %v477 = vmul.f32 %v417, %v437
    %v478 = vadd.f32 %v408, %v470
    %v479 = vadd.f32 %v409, %v471
    %v480 = vadd.f32 %v410, %v472
    %v481 = vadd.f32 %v411, %v473
    %v482 = vadd.f32 %v412, %v474
    %v483 = vadd.f32 %v413, %v475
    %v484 = vadd.f32 %v414, %v476
    %v485 = vadd.f32 %v415, %v477
    %v486 = vmul.f32 %v419, %v421
    %v487 = vmul.f32 %v419, %v422
    %v488 = vmul.f32 %v419, %v423
    %v489 = vmul.f32 %v419, %v424
    %v490 = vmul.f32 %v419, %v425
    %v491 = vmul.f32 %v419, %v426
    %v492 = vmul.f32 %v419, %v427
    %v493 = vmul.f32 %v419, %v428
    %v494 = vadd.f32 %v478, %v486
    %v495 = vadd.f32 %v479, %v487
    %v496 = vadd.f32 %v480, %v488
    %v497 = vadd.f32 %v481, %v489
    %v498 = vadd.f32 %v482, %v490
    %v499 = vadd.f32 %v483, %v491
    %v500 = vadd.f32 %v484, %v492
    %v501 = vadd.f32 %v485, %v493
    %s502 = scalar_lea.vmem [#allocation2], 40
    %v503 = vld [vmem:[%s502] sm:$0xff]
    %s504 = scalar_lea.vmem [#allocation5], 40
    %v505 = vld [vmem:[%s504] sm:$0xff]
    %s506 = scalar_lea.vmem [#allocation7], 320
    %v507 = vld [vmem:[%s506] sm:$0xff]
    %v508 = vld [vmem:[%s506 + $0x8] sm:$0xff]
    %v509 = vld [vmem:[%s506 + $0x10] sm:$0xff]
    %v510 = vld [vmem:[%s506 + $0x18] sm:$0xff]
    %v511 = vld [vmem:[%s506 + $0x20] sm:$0xff]
    %v512 = vld [vmem:[%s506 + $0x28] sm:$0xff]
    %v513 = vld [vmem:[%s506 + $0x30] sm:$0xff]
    %v514 = vld [vmem:[%s506 + $0x38] sm:$0xff]
    %s515 = scalar_lea.vmem [#allocation8], 320
    %v516 = vld [vmem:[%s515] sm:$0xff]
    %v517 = vld [vmem:[%s515 + $0x8] sm:$0xff]
    %v518 = vld [vmem:[%s515 + $0x10] sm:$0xff]
    %v519 = vld [vmem:[%s515 + $0x18] sm:$0xff]
    %v520 = vld [vmem:[%s515 + $0x20] sm:$0xff]
    %v521 = vld [vmem:[%s515 + $0x28] sm:$0xff]
    %v522 = vld [vmem:[%s515 + $0x30] sm:$0xff]
    %v523 = vld [vmem:[%s515 + $0x38] sm:$0xff]
    %v524 = vmul.f32 %v503, %v507
    %v525 = vmul.f32 %v503, %v508
    %v526 = vmul.f32 %v503, %v509
    %v527 = vmul.f32 %v503, %v510
    %v528 = vmul.f32 %v503, %v511
    %v529 = vmul.f32 %v503, %v512
    %v530 = vmul.f32 %v503, %v513
    %v531 = vmul.f32 %v503, %v514
    %v532 = vadd.f32 %v462, %v524
    %v533 = vadd.f32 %v463, %v525
    %v534 = vadd.f32 %v464, %v526
    %v535 = vadd.f32 %v465, %v527
    %v536 = vadd.f32 %v466, %v528
    %v537 = vadd.f32 %v467, %v529
    %v538 = vadd.f32 %v468, %v530
    %v539 = vadd.f32 %v469, %v531
    %v540 = vmul.f32 %v505, %v516
    %v541 = vmul.f32 %v505, %v517
    %v542 = vmul.f32 %v505, %v518
    %v543 = vmul.f32 %v505, %v519
    %v544 = vmul.f32 %v505, %v520
    %v545 = vmul.f32 %v505, %v521
    %v546 = vmul.f32 %v505, %v522
    %v547 = vmul.f32 %v505, %v523
    %v548 = vsub.f32 %v532, %v540
    %v549 = vsub.f32 %v533, %v541
    %v550 = vsub.f32 %v534, %v542
    %v551 = vsub.f32 %v535, %v543
    %v552 = vsub.f32 %v536, %v544
    %v553 = vsub.f32 %v537, %v545
    %v554 = vsub.f32 %v538, %v546
    %v555 = vsub.f32 %v539, %v547
    %v556 = vmul.f32 %v503, %v516
    %v557 = vmul.f32 %v503, %v517
    %v558 = vmul.f32 %v503, %v518
    %v559 = vmul.f32 %v503, %v519
    %v560 = vmul.f32 %v503, %v520
    %v561 = vmul.f32 %v503, %v521
    %v562 = vmul.f32 %v503, %v522
    %v563 = vmul.f32 %v503, %v523
    %v564 = vadd.f32 %v494, %v556
    %v565 = vadd.f32 %v495, %v557
    %v566 = vadd.f32 %v496, %v558
    %v567 = vadd.f32 %v497, %v559
    %v568 = vadd.f32 %v498, %v560
    %v569 = vadd.f32 %v499, %v561
    %v570 = vadd.f32 %v500, %v562
    %v571 = vadd.f32 %v501, %v563
    %v572 = vmul.f32 %v505, %v507
    %v573 = vmul.f32 %v505, %v508
    %v574 = vmul.f32 %v505, %v509
    %v575 = vmul.f32 %v505, %v510
    %v576 = vmul.f32 %v505, %v511
    %v577 = vmul.f32 %v505, %v512
    %v578 = vmul.f32 %v505, %v513
    %v579 = vmul.f32 %v505, %v514
    %v580 = vadd.f32 %v564, %v572
    %v581 = vadd.f32 %v565, %v573
    %v582 = vadd.f32 %v566, %v574
    %v583 = vadd.f32 %v567, %v575
    %v584 = vadd.f32 %v568, %v576
    %v585 = vadd.f32 %v569, %v577
    %v586 = vadd.f32 %v570, %v578
    %v587 = vadd.f32 %v571, %v579
    %s588 = scalar_lea.vmem [#allocation2], 48
    %v589 = vld [vmem:[%s588] sm:$0xff]
    %s590 = scalar_lea.vmem [#allocation5], 48
    %v591 = vld [vmem:[%s590] sm:$0xff]
    %s592 = scalar_lea.vmem [#allocation7], 384
    %v593 = vld [vmem:[%s592] sm:$0xff]
    %v594 = vld [vmem:[%s592 + $0x8] sm:$0xff]
    %v595 = vld [vmem:[%s592 + $0x10] sm:$0xff]
    %v596 = vld [vmem:[%s592 + $0x18] sm:$0xff]
    %v597 = vld [vmem:[%s592 + $0x20] sm:$0xff]
    %v598 = vld [vmem:[%s592 + $0x28] sm:$0xff]
    %v599 = vld [vmem:[%s592 + $0x30] sm:$0xff]
    %v600 = vld [vmem:[%s592 + $0x38] sm:$0xff]
    %s601 = scalar_lea.vmem [#allocation8], 384
    %v602 = vld [vmem:[%s601] sm:$0xff]
    %v603 = vld [vmem:[%s601 + $0x8] sm:$0xff]
    %v604 = vld [vmem:[%s601 + $0x10] sm:$0xff]
    %v605 = vld [vmem:[%s601 + $0x18] sm:$0xff]
    %v606 = vld [vmem:[%s601 + $0x20] sm:$0xff]
    %v607 = vld [vmem:[%s601 + $0x28] sm:$0xff]
    %v608 = vld [vmem:[%s601 + $0x30] sm:$0xff]
    %v609 = vld [vmem:[%s601 + $0x38] sm:$0xff]
    %v610 = vmul.f32 %v589, %v593
    %v611 = vmul.f32 %v589, %v594
    %v612 = vmul.f32 %v589, %v595
    %v613 = vmul.f32 %v589, %v596
    %v614 = vmul.f32 %v589, %v597
    %v615 = vmul.f32 %v589, %v598
    %v616 = vmul.f32 %v589, %v599
    %v617 = vmul.f32 %v589, %v600
    %v618 = vadd.f32 %v548, %v610
    %v619 = vadd.f32 %v549, %v611
    %v620 = vadd.f32 %v550, %v612
    %v621 = vadd.f32 %v551, %v613
    %v622 = vadd.f32 %v552, %v614
    %v623 = vadd.f32 %v553, %v615
    %v624 = vadd.f32 %v554, %v616
    %v625 = vadd.f32 %v555, %v617
    %v626 = vmul.f32 %v591, %v602
    %v627 = vmul.f32 %v591, %v603
    %v628 = vmul.f32 %v591, %v604
    %v629 = vmul.f32 %v591, %v605
    %v630 = vmul.f32 %v591, %v606
    %v631 = vmul.f32 %v591, %v607
    %v632 = vmul.f32 %v591, %v608
    %v633 = vmul.f32 %v591, %v609
    %v634 = vsub.f32 %v618, %v626
    %v635 = vsub.f32 %v619, %v627
    %v636 = vsub.f32 %v620, %v628
    %v637 = vsub.f32 %v621, %v629
    %v638 = vsub.f32 %v622, %v630
    %v639 = vsub.f32 %v623, %v631
    %v640 = vsub.f32 %v624, %v632
    %v641 = vsub.f32 %v625, %v633
    %v642 = vmul.f32 %v589, %v602
    %v643 = vmul.f32 %v589, %v603
    %v644 = vmul.f32 %v589, %v604
    %v645 = vmul.f32 %v589, %v605
    %v646 = vmul.f32 %v589, %v606
    %v647 = vmul.f32 %v589, %v607
    %v648 = vmul.f32 %v589, %v608
    %v649 = vmul.f32 %v589, %v609
    %v650 = vadd.f32 %v580, %v642
    %v651 = vadd.f32 %v581, %v643
    %v652 = vadd.f32 %v582, %v644
    %v653 = vadd.f32 %v583, %v645
    %v654 = vadd.f32 %v584, %v646
    %v655 = vadd.f32 %v585, %v647
    %v656 = vadd.f32 %v586, %v648
    %v657 = vadd.f32 %v587, %v649
    %v658 = vmul.f32 %v591, %v593
    %v659 = vmul.f32 %v591, %v594
    %v660 = vmul.f32 %v591, %v595
    %v661 = vmul.f32 %v591, %v596
    %v662 = vmul.f32 %v591, %v597
    %v663 = vmul.f32 %v591, %v598
    %v664 = vmul.f32 %v591, %v599
    %v665 = vmul.f32 %v591, %v600
    %v666 = vadd.f32 %v650, %v658
    %v667 = vadd.f32 %v651, %v659
    %v668 = vadd.f32 %v652, %v660
    %v669 = vadd.f32 %v653, %v661
    %v670 = vadd.f32 %v654, %v662
    %v671 = vadd.f32 %v655, %v663
    %v672 = vadd.f32 %v656, %v664
    %v673 = vadd.f32 %v657, %v665
    %s674 = scalar_lea.vmem [#allocation2], 56
    %v675 = vld [vmem:[%s674] sm:$0xff]
    %s676 = scalar_lea.vmem [#allocation5], 56
    %v677 = vld [vmem:[%s676] sm:$0xff]
    %s678 = scalar_lea.vmem [#allocation7], 448
    %v679 = vld [vmem:[%s678] sm:$0xff]
    %v680 = vld [vmem:[%s678 + $0x8] sm:$0xff]
    %v681 = vld [vmem:[%s678 + $0x10] sm:$0xff]
    %v682 = vld [vmem:[%s678 + $0x18] sm:$0xff]
    %v683 = vld [vmem:[%s678 + $0x20] sm:$0xff]
    %v684 = vld [vmem:[%s678 + $0x28] sm:$0xff]
    %v685 = vld [vmem:[%s678 + $0x30] sm:$0xff]
    %v686 = vld [vmem:[%s678 + $0x38] sm:$0xff]
    %s687 = scalar_lea.vmem [#allocation8], 448
    %v688 = vld [vmem:[%s687] sm:$0xff]
    %v689 = vld [vmem:[%s687 + $0x8] sm:$0xff]
    %v690 = vld [vmem:[%s687 + $0x10] sm:$0xff]
    %v691 = vld [vmem:[%s687 + $0x18] sm:$0xff]
    %v692 = vld [vmem:[%s687 + $0x20] sm:$0xff]
    %v693 = vld [vmem:[%s687 + $0x28] sm:$0xff]
    %v694 = vld [vmem:[%s687 + $0x30] sm:$0xff]
    %v695 = vld [vmem:[%s687 + $0x38] sm:$0xff]
    %v696 = vmul.f32 %v675, %v679
    %v697 = vmul.f32 %v675, %v680
    %v698 = vmul.f32 %v675, %v681
    %v699 = vmul.f32 %v675, %v682
    %v700 = vmul.f32 %v675, %v683
    %v701 = vmul.f32 %v675, %v684
    %v702 = vmul.f32 %v675, %v685
    %v703 = vmul.f32 %v675, %v686
    %v704 = vadd.f32 %v634, %v696
    %v705 = vadd.f32 %v635, %v697
    %v706 = vadd.f32 %v636, %v698
    %v707 = vadd.f32 %v637, %v699
    %v708 = vadd.f32 %v638, %v700
    %v709 = vadd.f32 %v639, %v701
    %v710 = vadd.f32 %v640, %v702
    %v711 = vadd.f32 %v641, %v703
    %v712 = vmul.f32 %v677, %v688
    %v713 = vmul.f32 %v677, %v689
    %v714 = vmul.f32 %v677, %v690
    %v715 = vmul.f32 %v677, %v691
    %v716 = vmul.f32 %v677, %v692
    %v717 = vmul.f32 %v677, %v693
    %v718 = vmul.f32 %v677, %v694
    %v719 = vmul.f32 %v677, %v695
    %v720 = vsub.f32 %v704, %v712
    %v721 = vsub.f32 %v705, %v713
    %v722 = vsub.f32 %v706, %v714
    %v723 = vsub.f32 %v707, %v715
    %v724 = vsub.f32 %v708, %v716
    %v725 = vsub.f32 %v709, %v717
    %v726 = vsub.f32 %v710, %v718
    %v727 = vsub.f32 %v711, %v719
    %v728 = vmul.f32 %v675, %v688
    %v729 = vmul.f32 %v675, %v689
    %v730 = vmul.f32 %v675, %v690
    %v731 = vmul.f32 %v675, %v691
    %v732 = vmul.f32 %v675, %v692
    %v733 = vmul.f32 %v675, %v693
    %v734 = vmul.f32 %v675, %v694
    %v735 = vmul.f32 %v675, %v695
    %v736 = vadd.f32 %v666, %v728
    %v737 = vadd.f32 %v667, %v729
    %v738 = vadd.f32 %v668, %v730
    %v739 = vadd.f32 %v669, %v731
    %v740 = vadd.f32 %v670, %v732
    %v741 = vadd.f32 %v671, %v733
    %v742 = vadd.f32 %v672, %v734
    %v743 = vadd.f32 %v673, %v735
    %v744 = vmul.f32 %v677, %v679
    %v745 = vmul.f32 %v677, %v680
    %v746 = vmul.f32 %v677, %v681
    %v747 = vmul.f32 %v677, %v682
    %v748 = vmul.f32 %v677, %v683
    %v749 = vmul.f32 %v677, %v684
    %v750 = vmul.f32 %v677, %v685
    %v751 = vmul.f32 %v677, %v686
    %v752 = vadd.f32 %v736, %v744
    %v753 = vadd.f32 %v737, %v745
    %v754 = vadd.f32 %v738, %v746
    %v755 = vadd.f32 %v739, %v747
    %v756 = vadd.f32 %v740, %v748
    %v757 = vadd.f32 %v741, %v749
    %v758 = vadd.f32 %v742, %v750
    %v759 = vadd.f32 %v743, %v751
    %vm760 = vcmask 392192
    %761 = vst.msk [vmem:[#allocation10] sm:$0xff] %vm760, %v720
    %762 = vst.msk [vmem:[#allocation10 + $0x8] sm:$0xff] %vm760, %v721
    %763 = vst.msk [vmem:[#allocation10 + $0x10] sm:$0xff] %vm760, %v722
    %764 = vst.msk [vmem:[#allocation10 + $0x18] sm:$0xff] %vm760, %v723
    %765 = vst.msk [vmem:[#allocation10 + $0x20] sm:$0xff] %vm760, %v724
    %766 = vst.msk [vmem:[#allocation10 + $0x28] sm:$0xff] %vm760, %v725
    %767 = vst.msk [vmem:[#allocation10 + $0x30] sm:$0xff] %vm760, %v726
    %768 = vst.msk [vmem:[#allocation10 + $0x38] sm:$0xff] %vm760, %v727
    %769 = vst.msk [vmem:[#allocation11] sm:$0xff] %vm760, %v752
    %770 = vst.msk [vmem:[#allocation11 + $0x8] sm:$0xff] %vm760, %v753
    %771 = vst.msk [vmem:[#allocation11 + $0x10] sm:$0xff] %vm760, %v754
    %772 = vst.msk [vmem:[#allocation11 + $0x18] sm:$0xff] %vm760, %v755
    %773 = vst.msk [vmem:[#allocation11 + $0x20] sm:$0xff] %vm760, %v756
    %774 = vst.msk [vmem:[#allocation11 + $0x28] sm:$0xff] %vm760, %v757
    %775 = vst.msk [vmem:[#allocation11 + $0x30] sm:$0xff] %vm760, %v758
    %776 = vst.msk [vmem:[#allocation11 + $0x38] sm:$0xff] %vm760, %v759
    // Predicated region
    $region34: #{tpu_custom_call.1} parent=1 // pred_check
      _
    $region35: #{tpu_custom_call.1} parent=1 // pred_check_branch
      %778 = sbr.rel (0) target = $region37
    $region36: #{tpu_custom_call.1} parent=1 // pred_region
      %s780 = ssub.s32 1024, 1024
      %781 = vsyncadd [#allocation4], %s780
      %s782 = sshll.u32 [#allocation10], 4
      %s783 = int_to_ptr.vmem [resolvable:$true] %s782
      %788 = dma.vmem_to_hbm [thread:$0]  %s783, 1024, %s4, [#allocation4], 128, 128, 8
    $region37: #{tpu_custom_call.1} parent=1 // pred_fallthru
      _
    // Predicated region
    $region38: #{tpu_custom_call.1} parent=1 // pred_check
      _
    $region39: #{tpu_custom_call.1} parent=1 // pred_check_branch
      %790 = sbr.rel (0) target = $region41
    $region40: #{tpu_custom_call.1} parent=1 // pred_region
      %s792 = ssub.s32 1024, 1024
      %793 = vsyncadd [#allocation12], %s792
      %s794 = sshll.u32 [#allocation11], 4
      %s795 = int_to_ptr.vmem [resolvable:$true] %s794
      %800 = dma.vmem_to_hbm [thread:$0]  %s795, 1024, %s5, [#allocation12], 128, 128, 8
    $region41: #{tpu_custom_call.1} parent=1 // pred_fallthru
      _
    // Predicated region
    $region42: #{tpu_custom_call.1} parent=1 // pred_check
      _
    $region43: #{tpu_custom_call.1} parent=1 // pred_check_branch
      %802 = sbr.rel (0) target = $region45
    $region44: #{tpu_custom_call.1} parent=1 // pred_region
      %803 = dma.done [#allocation4], 1024
    $region45: #{tpu_custom_call.1} parent=1 // pred_fallthru
      _
    // Predicated region
    $region46: #{tpu_custom_call.1} parent=1 // pred_check
      _
    $region47: #{tpu_custom_call.1} parent=1 // pred_check_branch
      %805 = sbr.rel (0) target = $region49
    $region48: #{tpu_custom_call.1} parent=1 // pred_region
      %806 = dma.done [#allocation12], 1024
    $region49: #{tpu_custom_call.1} parent=1 // pred_fallthru
      _
    %807 = vsyncpa [#allocation3], 1
    %808 = vsyncpa [#allocation6], 1
    %809 = vsyncpa [#allocation9], 1
    %810 = vsyncpa [#allocation4], 1
    %811 = vsyncpa [#allocation12], 1

</llo_original>
